<compile_context>
chip_gen: v7x
topology: tpu7x:2x2x1
jax: 0.10.0
libtpu: 0.0.40
codegen_flags: <defaults>
</compile_context>

<pallas_src>
import functools

import jax
import jax.numpy as jnp
from jax.experimental import pallas as pl
from jax.experimental.pallas import tpu as pltpu


def _ray_march_kernel(dminmax_ref, colors_ref, dens_ref, depths_ref,
                      packed_ref, w_ref, alpha_scr,
                      *, clamp_mode, volume_init, white_back):
    S, TN = w_ref.shape
    C = colors_ref.shape[0]

    def density_to_sigma(x):
        if clamp_mode == 'softplus':
            x = x + volume_init
            # Stable softplus without log1p (guaranteed Mosaic lowering): for tiny
            # t = exp(-|x|), log(1+t) ~= t, which keeps the 1e10-amplified last
            # interval numerically faithful to F.softplus.
            t = jnp.exp(-jnp.abs(x))
            log1p_t = jnp.where(t < 1e-6, t, jnp.log(1.0 + t))
            return jnp.maximum(x, 0.0) + log1p_t
        elif clamp_mode == 'relu':
            return jnp.maximum(x, 0.0)
        elif clamp_mode == 'x^2':
            return x * x
        raise ValueError(f"unknown clamp_mode {clamp_mode}")

    # TODO(synk): nerf_noise > 0 path (torch.randn noise on densities) not implemented;
    #             default nerf_noise=0 matches the PyTorch forward.

    # alphas[s] = 1 - exp(-(depths[s+1] - depths[s]) * sigma[s])   for s < S-1
    # alphas[S-1] uses the "infinite" last interval delta = 1e10.
    # Built from plain sublane-offset ref loads (no roll / concat needed).
    d_lo = depths_ref[pl.ds(0, S - 1), :]                    # (S-1, TN)
    d_hi = depths_ref[pl.ds(1, S - 1), :]                    # (S-1, TN)
    sigma_main = density_to_sigma(dens_ref[pl.ds(0, S - 1), :])
    sigma_last = density_to_sigma(dens_ref[pl.ds(S - 1, 1), :])
    alpha_scr[pl.ds(0, S - 1), :] = 1.0 - jnp.exp(-(d_hi - d_lo) * sigma_main)
    alpha_scr[pl.ds(S - 1, 1), :] = 1.0 - jnp.exp(-1e10 * sigma_last)

    # Exclusive cumulative product along samples:
    #   weights[s] = alphas[s] * prod_{j<s} (1 - alphas[j] + 1e-10)
    # Transmittance is carried in a (1, TN) register row; the loop is fully unrolled
    # (S is static), alpha rows come from a read-only scratch and weight rows go
    # straight to the output block, so there is no serialized load->store chain
    # through the same buffer.
    trans = jnp.ones((1, TN), jnp.float32)
    for s in range(S):
        a = alpha_scr[pl.ds(s, 1), :]                        # (1, TN)
        w_ref[pl.ds(s, 1), :] = a * trans
        trans = trans * (1.0 - a + 1e-10)

    weights = w_ref[...]                                     # single dense reload
    depths = depths_ref[...]
    wsum = jnp.sum(weights, axis=0, keepdims=True)           # (1, TN)
    dsum = jnp.sum(weights * depths, axis=0, keepdims=True)  # (1, TN)

    depth_final = dsum / wsum
    depth_final = jnp.where(jnp.isnan(depth_final), jnp.inf, depth_final)
    depth_final = jnp.clip(depth_final, dminmax_ref[0], dminmax_ref[1])
    packed_ref[pl.ds(C, 1), :] = depth_final * 2.0 - 1.0

    for c in range(C):
        rgb_c = jnp.sum(weights * colors_ref[c], axis=0, keepdims=True)
        if white_back:
            rgb_c = rgb_c + 1.0 - wsum
        packed_ref[pl.ds(c, 1), :] = rgb_c * 2.0 - 1.0


def _pick_tn(N, S, C, cap=4096, vmem_budget=16 * 1024 * 1024):
    """Largest lane tile that divides N, fits a conservative VMEM budget (v7x-safe),
    and (when possible) keeps >= 2 grid steps so v7x's two TensorCores both work."""
    # bytes per lane: double-buffered inputs + outputs, single-buffered scratch.
    per_lane = 4 * (2 * ((C + 2) * S + (C + 1) + S) + S)
    cap = min(cap, max(128, vmem_budget // per_lane), N)
    if N >= 256:
        cap = min(cap, N // 2)
    cap = max(128, (cap // 128) * 128)
    for t in range(cap, 127, -128):
        if N % t == 0:
            return t
    return 128


def ray_march(colors, densities, depths, rendering_options, tn=None):
    """colors: [B,R,S,C], densities: [B,R,S,1], depths: [B,R,S,1]  (float32)."""
    B, R, S, C = colors.shape
    N = B * R
    assert N % 128 == 0, "batch * num_rays must be a multiple of 128"
    assert S >= 2, "need at least two depth samples"

    clamp_mode = rendering_options['clamp_mode']
    assert clamp_mode in ('softplus', 'relu', 'x^2')
    volume_init = float(rendering_options.get('volume_init', -1))
    white_back = bool(rendering_options.get('white_back', False))

    if tn is None:
        tn = _pick_tn(N, S, C)

    # Glue: move to kernel layout (rays on lanes).
    colors_t = jnp.transpose(colors.reshape(N, S, C), (2, 1, 0)).astype(jnp.float32)  # (C,S,N)
    dens_t = jnp.transpose(densities.reshape(N, S), (1, 0)).astype(jnp.float32)       # (S,N)
    dep_t = jnp.transpose(depths.reshape(N, S), (1, 0)).astype(jnp.float32)           # (S,N)

    # Global depth min/max (whole-tensor reduction) passed as SMEM scalars.
    dminmax = jnp.stack([jnp.min(depths), jnp.max(depths)]).astype(jnp.float32)       # (2,)

    kernel = functools.partial(_ray_march_kernel, clamp_mode=clamp_mode,
                               volume_init=volume_init, white_back=white_back)

    packed, weights_t = pl.pallas_call(
        kernel,
        out_shape=(jax.ShapeDtypeStruct((C + 1, N), jnp.float32),
                   jax.ShapeDtypeStruct((S, N), jnp.float32)),
        grid_spec=pltpu.PrefetchScalarGridSpec(
            num_scalar_prefetch=1,
            grid=(N // tn,),
            in_specs=[pl.BlockSpec((C, S, tn), lambda i, dm: (0, 0, i)),
                      pl.BlockSpec((S, tn), lambda i, dm: (0, i)),
                      pl.BlockSpec((S, tn), lambda i, dm: (0, i))],
            out_specs=[pl.BlockSpec((C + 1, tn), lambda i, dm: (0, i)),
                       pl.BlockSpec((S, tn), lambda i, dm: (0, i))],
            scratch_shapes=[pltpu.VMEM((S, tn), jnp.float32)]),
        compiler_params=pltpu.CompilerParams(
            dimension_semantics=("parallel",),
            vmem_limit_bytes=48 * 1024 * 1024),
    )(dminmax, colors_t, dens_t, dep_t)

    rgb_final = jnp.transpose(packed[:C], (1, 0)).reshape(B, R, C)
    depth_final = jnp.transpose(packed[C:C + 1], (1, 0)).reshape(B, R, 1)
    weights = jnp.transpose(weights_t, (1, 0)).reshape(B, R, S, 1)
    return rgb_final, depth_final, weights


def _ray_march_reference(colors, densities, depths, rendering_options):
    """Pure-JAX mirror of the PyTorch forward (nerf_noise == 0)."""
    deltas = depths[:, :, 1:] - depths[:, :, :-1]
    delta_inf = 1e10 * jnp.ones_like(deltas[:, :, :1])
    deltas = jnp.concatenate([deltas, delta_inf], axis=-2)
    if rendering_options['clamp_mode'] == 'softplus':
        x = densities + rendering_options.get('volume_init', -1)
        sp = jnp.maximum(x, 0.0) + jnp.log1p(jnp.exp(-jnp.abs(x)))
        alphas = 1 - jnp.exp(-deltas * sp)
    elif rendering_options['clamp_mode'] == 'relu':
        alphas = 1 - jnp.exp(-deltas * jnp.maximum(densities, 0.0))
    else:  # 'x^2'
        alphas = 1 - jnp.exp(-deltas * densities ** 2)
    alphas_shifted = jnp.concatenate(
        [jnp.ones_like(alphas[:, :, :1]), 1 - alphas + 1e-10], axis=-2)
    weights = alphas * jnp.cumprod(alphas_shifted, axis=-2)[:, :, :-1]
    rgb_final = jnp.sum(weights * colors, axis=-2)
    depth_final = jnp.sum(weights * depths, axis=-2) / weights.sum(axis=2)
    depth_final = jnp.nan_to_num(depth_final, nan=jnp.inf)
    depth_final = jnp.clip(depth_final, jnp.min(depths), jnp.max(depths))
    if rendering_options.get('white_back', False):
        rgb_final = rgb_final + 1 - weights.sum(axis=2)
    return rgb_final * 2 - 1, depth_final * 2 - 1, weights


if __name__ == "__main__":
    key = jax.random.PRNGKey(0)
    B, R, S, C = 2, 128, 16, 3          # 2 batches x 128 rays x 16 samples x RGB
    kc, kd, kz = jax.random.split(key, 3)
    colors = jax.random.uniform(kc, (B, R, S, C), dtype=jnp.float32)
    densities = jax.random.normal(kd, (B, R, S, 1), dtype=jnp.float32)
    depths = jnp.sort(
        jax.random.uniform(kz, (B, R, S, 1), minval=0.5, maxval=2.5, dtype=jnp.float32),
        axis=2)
    rendering_options = {'clamp_mode': 'softplus', 'nerf_noise': 0,
                         'volume_init': -1, 'white_back': False}

    rgb, depth, weights = ray_march(colors, densities, depths, rendering_options)
    jax.block_until_ready((rgb, depth, weights))

    rgb_r, depth_r, weights_r = _ray_march_reference(colors, densities, depths,
                                                     rendering_options)
    assert rgb.shape == (B, R, C) and depth.shape == (B, R, 1) and weights.shape == (B, R, S, 1)
    assert jnp.allclose(rgb, rgb_r, rtol=1e-5, atol=1e-5)
    assert jnp.allclose(depth, depth_r, rtol=1e-5, atol=1e-5)
    assert jnp.allclose(weights, weights_r, rtol=1e-5, atol=1e-5)

    print("KERNEL_OK")
</pallas_src>

<mosaic_0001>
module attributes {stable_mosaic.version = 11 : i64} {
  func.func @_ray_march_kernel(%arg0: i32, %arg1: memref<2xf32, #tpu.memory_space<smem>>, %arg2: memref<3x16x128xf32, #tpu.memory_space<vmem>>, %arg3: memref<16x128xf32, #tpu.memory_space<vmem>>, %arg4: memref<16x128xf32, #tpu.memory_space<vmem>>, %arg5: memref<4x128xf32, #tpu.memory_space<vmem>>, %arg6: memref<16x128xf32, #tpu.memory_space<vmem>>, %arg7: memref<16x128xf32, #tpu.memory_space<vmem>>) attributes {dimension_semantics = [#tpu.dimension_semantics<parallel>], iteration_bounds = array<i64: 2>, scalar_prefetch = 1 : i64, scratch_operands = 1 : i64, tpu.core_type = #tpu.core_type<tc>, window_params = [{transform_indices = @transform_0, window_bounds = array<i64: 3, 16, 128>}, {transform_indices = @transform_1, window_bounds = array<i64: 16, 128>}, {transform_indices = @transform_2, window_bounds = array<i64: 16, 128>}, {transform_indices = @transform_3, window_bounds = array<i64: 4, 128>}, {transform_indices = @transform_4, window_bounds = array<i64: 16, 128>}]} {
    %c0 = arith.constant 0 : index
    %c0_0 = arith.constant 0 : index
    %0 = vector.load %arg4[%c0, %c0_0] : memref<16x128xf32, #tpu.memory_space<vmem>>, vector<15x128xf32>
    %c1 = arith.constant 1 : index
    %c0_1 = arith.constant 0 : index
    %1 = vector.load %arg4[%c1, %c0_1] : memref<16x128xf32, #tpu.memory_space<vmem>>, vector<15x128xf32>
    %c0_2 = arith.constant 0 : index
    %c0_3 = arith.constant 0 : index
    %2 = vector.load %arg3[%c0_2, %c0_3] : memref<16x128xf32, #tpu.memory_space<vmem>>, vector<15x128xf32>
    %cst = arith.constant -1.000000e+00 : f32
    %3 = vector.broadcast %cst : f32 to vector<15x128xf32>
    %4 = arith.addf %2, %3 : vector<15x128xf32>
    %5 = math.absf %4 : vector<15x128xf32>
    %cst_4 = arith.constant 0.000000e+00 : f32
    %6 = vector.broadcast %cst_4 : f32 to vector<15x128xf32>
    %7 = arith.subf %6, %5 : vector<15x128xf32>
    %8 = math.exp %7 : vector<15x128xf32>
    %cst_5 = arith.constant 9.99999997E-7 : f32
    %9 = vector.broadcast %cst_5 : f32 to vector<15x128xf32>
    %10 = arith.cmpf olt, %8, %9 : vector<15x128xf32>
    %cst_6 = arith.constant 1.000000e+00 : f32
    %11 = vector.broadcast %cst_6 : f32 to vector<15x128xf32>
    %12 = arith.addf %11, %8 : vector<15x128xf32>
    %13 = math.log %12 : vector<15x128xf32>
    %14 = arith.select %10, %8, %13 : vector<15x128xi1>, vector<15x128xf32>
    %cst_7 = arith.constant 0.000000e+00 : f32
    %15 = vector.broadcast %cst_7 : f32 to vector<15x128xf32>
    %16 = arith.maximumf %4, %15 : vector<15x128xf32>
    %17 = arith.addf %16, %14 : vector<15x128xf32>
    %c15 = arith.constant 15 : index
    %c0_8 = arith.constant 0 : index
    %18 = vector.load %arg3[%c15, %c0_8] : memref<16x128xf32, #tpu.memory_space<vmem>>, vector<1x128xf32>
    %cst_9 = arith.constant -1.000000e+00 : f32
    %19 = vector.broadcast %cst_9 : f32 to vector<1x128xf32>
    %20 = arith.addf %18, %19 : vector<1x128xf32>
    %21 = math.absf %20 : vector<1x128xf32>
    %cst_10 = arith.constant 0.000000e+00 : f32
    %22 = vector.broadcast %cst_10 : f32 to vector<1x128xf32>
    %23 = arith.subf %22, %21 : vector<1x128xf32>
    %24 = math.exp %23 : vector<1x128xf32>
    %cst_11 = arith.constant 9.99999997E-7 : f32
    %25 = vector.broadcast %cst_11 : f32 to vector<1x128xf32>
    %26 = arith.cmpf olt, %24, %25 : vector<1x128xf32>
    %cst_12 = arith.constant 1.000000e+00 : f32
    %27 = vector.broadcast %cst_12 : f32 to vector<1x128xf32>
    %28 = arith.addf %27, %24 : vector<1x128xf32>
    %29 = math.log %28 : vector<1x128xf32>
    %30 = arith.select %26, %24, %29 : vector<1x128xi1>, vector<1x128xf32>
    %cst_13 = arith.constant 0.000000e+00 : f32
    %31 = vector.broadcast %cst_13 : f32 to vector<1x128xf32>
    %32 = arith.maximumf %20, %31 : vector<1x128xf32>
    %33 = arith.addf %32, %30 : vector<1x128xf32>
    %34 = arith.subf %1, %0 : vector<15x128xf32>
    %cst_14 = arith.constant 0.000000e+00 : f32
    %35 = vector.broadcast %cst_14 : f32 to vector<15x128xf32>
    %36 = arith.subf %35, %34 : vector<15x128xf32>
    %37 = arith.mulf %36, %17 : vector<15x128xf32>
    %38 = math.exp %37 : vector<15x128xf32>
    %cst_15 = arith.constant 1.000000e+00 : f32
    %39 = vector.broadcast %cst_15 : f32 to vector<15x128xf32>
    %40 = arith.subf %39, %38 : vector<15x128xf32>
    %c0_16 = arith.constant 0 : index
    %c0_17 = arith.constant 0 : index
    %41 = vector.load %arg7[%c0_16, %c0_17] : memref<16x128xf32, #tpu.memory_space<vmem>>, vector<15x128xf32>
    tpu.vector_store %arg7[%c0_16, %c0_17], %40 {strides = array<i32>} : memref<16x128xf32, #tpu.memory_space<vmem>>, vector<15x128xf32>,
    %cst_18 = arith.constant -1.000000e+10 : f32
    %42 = vector.broadcast %cst_18 : f32 to vector<1x128xf32>
    %43 = arith.mulf %42, %33 : vector<1x128xf32>
    %44 = math.exp %43 : vector<1x128xf32>
    %cst_19 = arith.constant 1.000000e+00 : f32
    %45 = vector.broadcast %cst_19 : f32 to vector<1x128xf32>
    %46 = arith.subf %45, %44 : vector<1x128xf32>
    %c15_20 = arith.constant 15 : index
    %c0_21 = arith.constant 0 : index
    %47 = vector.load %arg7[%c15_20, %c0_21] : memref<16x128xf32, #tpu.memory_space<vmem>>, vector<1x128xf32>
    tpu.vector_store %arg7[%c15_20, %c0_21], %46 {strides = array<i32>} : memref<16x128xf32, #tpu.memory_space<vmem>>, vector<1x128xf32>,
    %cst_22 = arith.constant 1.000000e+00 : f32
    %48 = vector.broadcast %cst_22 : f32 to vector<1x128xf32>
    %c0_23 = arith.constant 0 : index
    %c0_24 = arith.constant 0 : index
    %49 = vector.load %arg7[%c0_23, %c0_24] : memref<16x128xf32, #tpu.memory_space<vmem>>, vector<1x128xf32>
    %50 = arith.mulf %49, %48 : vector<1x128xf32>
    %c0_25 = arith.constant 0 : index
    %c0_26 = arith.constant 0 : index
    %51 = vector.load %arg6[%c0_25, %c0_26] : memref<16x128xf32, #tpu.memory_space<vmem>>, vector<1x128xf32>
    tpu.vector_store %arg6[%c0_25, %c0_26], %50 {strides = array<i32>} : memref<16x128xf32, #tpu.memory_space<vmem>>, vector<1x128xf32>,
    %cst_27 = arith.constant 1.000000e+00 : f32
    %52 = vector.broadcast %cst_27 : f32 to vector<1x128xf32>
    %53 = arith.subf %52, %49 : vector<1x128xf32>
    %cst_28 = arith.constant 1.000000e-10 : f32
    %54 = vector.broadcast %cst_28 : f32 to vector<1x128xf32>
    %55 = arith.addf %53, %54 : vector<1x128xf32>
    %56 = arith.mulf %48, %55 : vector<1x128xf32>
    %c1_29 = arith.constant 1 : index
    %c0_30 = arith.constant 0 : index
    %57 = vector.load %arg7[%c1_29, %c0_30] : memref<16x128xf32, #tpu.memory_space<vmem>>, vector<1x128xf32>
    %58 = arith.mulf %57, %56 : vector<1x128xf32>
    %c1_31 = arith.constant 1 : index
    %c0_32 = arith.constant 0 : index
    %59 = vector.load %arg6[%c1_31, %c0_32] : memref<16x128xf32, #tpu.memory_space<vmem>>, vector<1x128xf32>
    tpu.vector_store %arg6[%c1_31, %c0_32], %58 {strides = array<i32>} : memref<16x128xf32, #tpu.memory_space<vmem>>, vector<1x128xf32>,
    %cst_33 = arith.constant 1.000000e+00 : f32
    %60 = vector.broadcast %cst_33 : f32 to vector<1x128xf32>
    %61 = arith.subf %60, %57 : vector<1x128xf32>
    %cst_34 = arith.constant 1.000000e-10 : f32
    %62 = vector.broadcast %cst_34 : f32 to vector<1x128xf32>
    %63 = arith.addf %61, %62 : vector<1x128xf32>
    %64 = arith.mulf %56, %63 : vector<1x128xf32>
    %c2 = arith.constant 2 : index
    %c0_35 = arith.constant 0 : index
    %65 = vector.load %arg7[%c2, %c0_35] : memref<16x128xf32, #tpu.memory_space<vmem>>, vector<1x128xf32>
    %66 = arith.mulf %65, %64 : vector<1x128xf32>
    %c2_36 = arith.constant 2 : index
    %c0_37 = arith.constant 0 : index
    %67 = vector.load %arg6[%c2_36, %c0_37] : memref<16x128xf32, #tpu.memory_space<vmem>>, vector<1x128xf32>
    tpu.vector_store %arg6[%c2_36, %c0_37], %66 {strides = array<i32>} : memref<16x128xf32, #tpu.memory_space<vmem>>, vector<1x128xf32>,
    %cst_38 = arith.constant 1.000000e+00 : f32
    %68 = vector.broadcast %cst_38 : f32 to vector<1x128xf32>
    %69 = arith.subf %68, %65 : vector<1x128xf32>
    %cst_39 = arith.constant 1.000000e-10 : f32
    %70 = vector.broadcast %cst_39 : f32 to vector<1x128xf32>
    %71 = arith.addf %69, %70 : vector<1x128xf32>
    %72 = arith.mulf %64, %71 : vector<1x128xf32>
    %c3 = arith.constant 3 : index
    %c0_40 = arith.constant 0 : index
    %73 = vector.load %arg7[%c3, %c0_40] : memref<16x128xf32, #tpu.memory_space<vmem>>, vector<1x128xf32>
    %74 = arith.mulf %73, %72 : vector<1x128xf32>
    %c3_41 = arith.constant 3 : index
    %c0_42 = arith.constant 0 : index
    %75 = vector.load %arg6[%c3_41, %c0_42] : memref<16x128xf32, #tpu.memory_space<vmem>>, vector<1x128xf32>
    tpu.vector_store %arg6[%c3_41, %c0_42], %74 {strides = array<i32>} : memref<16x128xf32, #tpu.memory_space<vmem>>, vector<1x128xf32>,
    %cst_43 = arith.constant 1.000000e+00 : f32
    %76 = vector.broadcast %cst_43 : f32 to vector<1x128xf32>
    %77 = arith.subf %76, %73 : vector<1x128xf32>
    %cst_44 = arith.constant 1.000000e-10 : f32
    %78 = vector.broadcast %cst_44 : f32 to vector<1x128xf32>
    %79 = arith.addf %77, %78 : vector<1x128xf32>
    %80 = arith.mulf %72, %79 : vector<1x128xf32>
    %c4 = arith.constant 4 : index
    %c0_45 = arith.constant 0 : index
    %81 = vector.load %arg7[%c4, %c0_45] : memref<16x128xf32, #tpu.memory_space<vmem>>, vector<1x128xf32>
    %82 = arith.mulf %81, %80 : vector<1x128xf32>
    %c4_46 = arith.constant 4 : index
    %c0_47 = arith.constant 0 : index
    %83 = vector.load %arg6[%c4_46, %c0_47] : memref<16x128xf32, #tpu.memory_space<vmem>>, vector<1x128xf32>
    tpu.vector_store %arg6[%c4_46, %c0_47], %82 {strides = array<i32>} : memref<16x128xf32, #tpu.memory_space<vmem>>, vector<1x128xf32>,
    %cst_48 = arith.constant 1.000000e+00 : f32
    %84 = vector.broadcast %cst_48 : f32 to vector<1x128xf32>
    %85 = arith.subf %84, %81 : vector<1x128xf32>
    %cst_49 = arith.constant 1.000000e-10 : f32
    %86 = vector.broadcast %cst_49 : f32 to vector<1x128xf32>
    %87 = arith.addf %85, %86 : vector<1x128xf32>
    %88 = arith.mulf %80, %87 : vector<1x128xf32>
    %c5 = arith.constant 5 : index
    %c0_50 = arith.constant 0 : index
    %89 = vector.load %arg7[%c5, %c0_50] : memref<16x128xf32, #tpu.memory_space<vmem>>, vector<1x128xf32>
    %90 = arith.mulf %89, %88 : vector<1x128xf32>
    %c5_51 = arith.constant 5 : index
    %c0_52 = arith.constant 0 : index
    %91 = vector.load %arg6[%c5_51, %c0_52] : memref<16x128xf32, #tpu.memory_space<vmem>>, vector<1x128xf32>
    tpu.vector_store %arg6[%c5_51, %c0_52], %90 {strides = array<i32>} : memref<16x128xf32, #tpu.memory_space<vmem>>, vector<1x128xf32>,
    %cst_53 = arith.constant 1.000000e+00 : f32
    %92 = vector.broadcast %cst_53 : f32 to vector<1x128xf32>
    %93 = arith.subf %92, %89 : vector<1x128xf32>
    %cst_54 = arith.constant 1.000000e-10 : f32
    %94 = vector.broadcast %cst_54 : f32 to vector<1x128xf32>
    %95 = arith.addf %93, %94 : vector<1x128xf32>
    %96 = arith.mulf %88, %95 : vector<1x128xf32>
    %c6 = arith.constant 6 : index
    %c0_55 = arith.constant 0 : index
    %97 = vector.load %arg7[%c6, %c0_55] : memref<16x128xf32, #tpu.memory_space<vmem>>, vector<1x128xf32>
    %98 = arith.mulf %97, %96 : vector<1x128xf32>
    %c6_56 = arith.constant 6 : index
    %c0_57 = arith.constant 0 : index
    %99 = vector.load %arg6[%c6_56, %c0_57] : memref<16x128xf32, #tpu.memory_space<vmem>>, vector<1x128xf32>
    tpu.vector_store %arg6[%c6_56, %c0_57], %98 {strides = array<i32>} : memref<16x128xf32, #tpu.memory_space<vmem>>, vector<1x128xf32>,
    %cst_58 = arith.constant 1.000000e+00 : f32
    %100 = vector.broadcast %cst_58 : f32 to vector<1x128xf32>
    %101 = arith.subf %100, %97 : vector<1x128xf32>
    %cst_59 = arith.constant 1.000000e-10 : f32
    %102 = vector.broadcast %cst_59 : f32 to vector<1x128xf32>
    %103 = arith.addf %101, %102 : vector<1x128xf32>
    %104 = arith.mulf %96, %103 : vector<1x128xf32>
    %c7 = arith.constant 7 : index
    %c0_60 = arith.constant 0 : index
    %105 = vector.load %arg7[%c7, %c0_60] : memref<16x128xf32, #tpu.memory_space<vmem>>, vector<1x128xf32>
    %106 = arith.mulf %105, %104 : vector<1x128xf32>
    %c7_61 = arith.constant 7 : index
    %c0_62 = arith.constant 0 : index
    %107 = vector.load %arg6[%c7_61, %c0_62] : memref<16x128xf32, #tpu.memory_space<vmem>>, vector<1x128xf32>
    tpu.vector_store %arg6[%c7_61, %c0_62], %106 {strides = array<i32>} : memref<16x128xf32, #tpu.memory_space<vmem>>, vector<1x128xf32>,
    %cst_63 = arith.constant 1.000000e+00 : f32
    %108 = vector.broadcast %cst_63 : f32 to vector<1x128xf32>
    %109 = arith.subf %108, %105 : vector<1x128xf32>
    %cst_64 = arith.constant 1.000000e-10 : f32
    %110 = vector.broadcast %cst_64 : f32 to vector<1x128xf32>
    %111 = arith.addf %109, %110 : vector<1x128xf32>
    %112 = arith.mulf %104, %111 : vector<1x128xf32>
    %c8 = arith.constant 8 : index
    %c0_65 = arith.constant 0 : index
    %113 = vector.load %arg7[%c8, %c0_65] : memref<16x128xf32, #tpu.memory_space<vmem>>, vector<1x128xf32>
    %114 = arith.mulf %113, %112 : vector<1x128xf32>
    %c8_66 = arith.constant 8 : index
    %c0_67 = arith.constant 0 : index
    %115 = vector.load %arg6[%c8_66, %c0_67] : memref<16x128xf32, #tpu.memory_space<vmem>>, vector<1x128xf32>
    tpu.vector_store %arg6[%c8_66, %c0_67], %114 {strides = array<i32>} : memref<16x128xf32, #tpu.memory_space<vmem>>, vector<1x128xf32>,
    %cst_68 = arith.constant 1.000000e+00 : f32
    %116 = vector.broadcast %cst_68 : f32 to vector<1x128xf32>
    %117 = arith.subf %116, %113 : vector<1x128xf32>
    %cst_69 = arith.constant 1.000000e-10 : f32
    %118 = vector.broadcast %cst_69 : f32 to vector<1x128xf32>
    %119 = arith.addf %117, %118 : vector<1x128xf32>
    %120 = arith.mulf %112, %119 : vector<1x128xf32>
    %c9 = arith.constant 9 : index
    %c0_70 = arith.constant 0 : index
    %121 = vector.load %arg7[%c9, %c0_70] : memref<16x128xf32, #tpu.memory_space<vmem>>, vector<1x128xf32>
    %122 = arith.mulf %121, %120 : vector<1x128xf32>
    %c9_71 = arith.constant 9 : index
    %c0_72 = arith.constant 0 : index
    %123 = vector.load %arg6[%c9_71, %c0_72] : memref<16x128xf32, #tpu.memory_space<vmem>>, vector<1x128xf32>
    tpu.vector_store %arg6[%c9_71, %c0_72], %122 {strides = array<i32>} : memref<16x128xf32, #tpu.memory_space<vmem>>, vector<1x128xf32>,
    %cst_73 = arith.constant 1.000000e+00 : f32
    %124 = vector.broadcast %cst_73 : f32 to vector<1x128xf32>
    %125 = arith.subf %124, %121 : vector<1x128xf32>
    %cst_74 = arith.constant 1.000000e-10 : f32
    %126 = vector.broadcast %cst_74 : f32 to vector<1x128xf32>
    %127 = arith.addf %125, %126 : vector<1x128xf32>
    %128 = arith.mulf %120, %127 : vector<1x128xf32>
    %c10 = arith.constant 10 : index
    %c0_75 = arith.constant 0 : index
    %129 = vector.load %arg7[%c10, %c0_75] : memref<16x128xf32, #tpu.memory_space<vmem>>, vector<1x128xf32>
    %130 = arith.mulf %129, %128 : vector<1x128xf32>
    %c10_76 = arith.constant 10 : index
    %c0_77 = arith.constant 0 : index
    %131 = vector.load %arg6[%c10_76, %c0_77] : memref<16x128xf32, #tpu.memory_space<vmem>>, vector<1x128xf32>
    tpu.vector_store %arg6[%c10_76, %c0_77], %130 {strides = array<i32>} : memref<16x128xf32, #tpu.memory_space<vmem>>, vector<1x128xf32>,
    %cst_78 = arith.constant 1.000000e+00 : f32
    %132 = vector.broadcast %cst_78 : f32 to vector<1x128xf32>
    %133 = arith.subf %132, %129 : vector<1x128xf32>
    %cst_79 = arith.constant 1.000000e-10 : f32
    %134 = vector.broadcast %cst_79 : f32 to vector<1x128xf32>
    %135 = arith.addf %133, %134 : vector<1x128xf32>
    %136 = arith.mulf %128, %135 : vector<1x128xf32>
    %c11 = arith.constant 11 : index
    %c0_80 = arith.constant 0 : index
    %137 = vector.load %arg7[%c11, %c0_80] : memref<16x128xf32, #tpu.memory_space<vmem>>, vector<1x128xf32>
    %138 = arith.mulf %137, %136 : vector<1x128xf32>
    %c11_81 = arith.constant 11 : index
    %c0_82 = arith.constant 0 : index
    %139 = vector.load %arg6[%c11_81, %c0_82] : memref<16x128xf32, #tpu.memory_space<vmem>>, vector<1x128xf32>
    tpu.vector_store %arg6[%c11_81, %c0_82], %138 {strides = array<i32>} : memref<16x128xf32, #tpu.memory_space<vmem>>, vector<1x128xf32>,
    %cst_83 = arith.constant 1.000000e+00 : f32
    %140 = vector.broadcast %cst_83 : f32 to vector<1x128xf32>
    %141 = arith.subf %140, %137 : vector<1x128xf32>
    %cst_84 = arith.constant 1.000000e-10 : f32
    %142 = vector.broadcast %cst_84 : f32 to vector<1x128xf32>
    %143 = arith.addf %141, %142 : vector<1x128xf32>
    %144 = arith.mulf %136, %143 : vector<1x128xf32>
    %c12 = arith.constant 12 : index
    %c0_85 = arith.constant 0 : index
    %145 = vector.load %arg7[%c12, %c0_85] : memref<16x128xf32, #tpu.memory_space<vmem>>, vector<1x128xf32>
    %146 = arith.mulf %145, %144 : vector<1x128xf32>
    %c12_86 = arith.constant 12 : index
    %c0_87 = arith.constant 0 : index
    %147 = vector.load %arg6[%c12_86, %c0_87] : memref<16x128xf32, #tpu.memory_space<vmem>>, vector<1x128xf32>
    tpu.vector_store %arg6[%c12_86, %c0_87], %146 {strides = array<i32>} : memref<16x128xf32, #tpu.memory_space<vmem>>, vector<1x128xf32>,
    %cst_88 = arith.constant 1.000000e+00 : f32
    %148 = vector.broadcast %cst_88 : f32 to vector<1x128xf32>
    %149 = arith.subf %148, %145 : vector<1x128xf32>
    %cst_89 = arith.constant 1.000000e-10 : f32
    %150 = vector.broadcast %cst_89 : f32 to vector<1x128xf32>
    %151 = arith.addf %149, %150 : vector<1x128xf32>
    %152 = arith.mulf %144, %151 : vector<1x128xf32>
    %c13 = arith.constant 13 : index
    %c0_90 = arith.constant 0 : index
    %153 = vector.load %arg7[%c13, %c0_90] : memref<16x128xf32, #tpu.memory_space<vmem>>, vector<1x128xf32>
    %154 = arith.mulf %153, %152 : vector<1x128xf32>
    %c13_91 = arith.constant 13 : index
    %c0_92 = arith.constant 0 : index
    %155 = vector.load %arg6[%c13_91, %c0_92] : memref<16x128xf32, #tpu.memory_space<vmem>>, vector<1x128xf32>
    tpu.vector_store %arg6[%c13_91, %c0_92], %154 {strides = array<i32>} : memref<16x128xf32, #tpu.memory_space<vmem>>, vector<1x128xf32>,
    %cst_93 = arith.constant 1.000000e+00 : f32
    %156 = vector.broadcast %cst_93 : f32 to vector<1x128xf32>
    %157 = arith.subf %156, %153 : vector<1x128xf32>
    %cst_94 = arith.constant 1.000000e-10 : f32
    %158 = vector.broadcast %cst_94 : f32 to vector<1x128xf32>
    %159 = arith.addf %157, %158 : vector<1x128xf32>
    %160 = arith.mulf %152, %159 : vector<1x128xf32>
    %c14 = arith.constant 14 : index
    %c0_95 = arith.constant 0 : index
    %161 = vector.load %arg7[%c14, %c0_95] : memref<16x128xf32, #tpu.memory_space<vmem>>, vector<1x128xf32>
    %162 = arith.mulf %161, %160 : vector<1x128xf32>
    %c14_96 = arith.constant 14 : index
    %c0_97 = arith.constant 0 : index
    %163 = vector.load %arg6[%c14_96, %c0_97] : memref<16x128xf32, #tpu.memory_space<vmem>>, vector<1x128xf32>
    tpu.vector_store %arg6[%c14_96, %c0_97], %162 {strides = array<i32>} : memref<16x128xf32, #tpu.memory_space<vmem>>, vector<1x128xf32>,
    %cst_98 = arith.constant 1.000000e+00 : f32
    %164 = vector.broadcast %cst_98 : f32 to vector<1x128xf32>
    %165 = arith.subf %164, %161 : vector<1x128xf32>
    %cst_99 = arith.constant 1.000000e-10 : f32
    %166 = vector.broadcast %cst_99 : f32 to vector<1x128xf32>
    %167 = arith.addf %165, %166 : vector<1x128xf32>
    %168 = arith.mulf %160, %167 : vector<1x128xf32>
    %c15_100 = arith.constant 15 : index
    %c0_101 = arith.constant 0 : index
    %169 = vector.load %arg7[%c15_100, %c0_101] : memref<16x128xf32, #tpu.memory_space<vmem>>, vector<1x128xf32>
    %170 = arith.mulf %169, %168 : vector<1x128xf32>
    %c15_102 = arith.constant 15 : index
    %c0_103 = arith.constant 0 : index
    %171 = vector.load %arg6[%c15_102, %c0_103] : memref<16x128xf32, #tpu.memory_space<vmem>>, vector<1x128xf32>
    tpu.vector_store %arg6[%c15_102, %c0_103], %170 {strides = array<i32>} : memref<16x128xf32, #tpu.memory_space<vmem>>, vector<1x128xf32>,
    %c0_104 = arith.constant 0 : index
    %c0_105 = arith.constant 0 : index
    %172 = vector.load %arg6[%c0_104, %c0_105] : memref<16x128xf32, #tpu.memory_space<vmem>>, vector<16x128xf32>
    %c0_106 = arith.constant 0 : index
    %c0_107 = arith.constant 0 : index
    %173 = vector.load %arg4[%c0_106, %c0_107] : memref<16x128xf32, #tpu.memory_space<vmem>>, vector<16x128xf32>
    %cst_108 = arith.constant dense<0.000000e+00> : vector<128xf32>
    %174 = vector.multi_reduction <add>, %172, %cst_108 [0] : vector<16x128xf32> to vector<128xf32>
    %175 = vector.shape_cast %174 : vector<128xf32> to vector<1x128xf32>
    %176 = arith.mulf %172, %173 : vector<16x128xf32>
    %cst_109 = arith.constant dense<0.000000e+00> : vector<128xf32>
    %177 = vector.multi_reduction <add>, %176, %cst_109 [0] : vector<16x128xf32> to vector<128xf32>
    %178 = vector.shape_cast %177 : vector<128xf32> to vector<1x128xf32>
    %179 = arith.divf %178, %175 : vector<1x128xf32>
    %180 = arith.cmpf one, %179, %179 : vector<1x128xf32>
    %cst_110 = arith.constant 0x7F800000 : f32
    %181 = vector.broadcast %cst_110 : f32 to vector<1x128xf32>
    %182 = arith.select %180, %181, %179 : vector<1x128xi1>, vector<1x128xf32>
    %c0_111 = arith.constant 0 : index
    %183 = memref.load %arg1[%c0_111] : memref<2xf32, #tpu.memory_space<smem>>
    %c1_112 = arith.constant 1 : index
    %184 = memref.load %arg1[%c1_112] : memref<2xf32, #tpu.memory_space<smem>>
    %185 = vector.broadcast %183 : f32 to vector<1x128xf32>
    %186 = arith.maximumf %185, %182 : vector<1x128xf32>
    %187 = vector.broadcast %184 : f32 to vector<1x128xf32>
    %188 = arith.minimumf %187, %186 : vector<1x128xf32>
    %cst_113 = arith.constant 2.000000e+00 : f32
    %189 = vector.broadcast %cst_113 : f32 to vector<1x128xf32>
    %190 = arith.mulf %188, %189 : vector<1x128xf32>
    %cst_114 = arith.constant 1.000000e+00 : f32
    %191 = vector.broadcast %cst_114 : f32 to vector<1x128xf32>
    %192 = arith.subf %190, %191 : vector<1x128xf32>
    %c3_115 = arith.constant 3 : index
    %c0_116 = arith.constant 0 : index
    %193 = vector.load %arg5[%c3_115, %c0_116] : memref<4x128xf32, #tpu.memory_space<vmem>>, vector<1x128xf32>
    tpu.vector_store %arg5[%c3_115, %c0_116], %192 {strides = array<i32>} : memref<4x128xf32, #tpu.memory_space<vmem>>, vector<1x128xf32>,
    %c0_117 = arith.constant 0 : index
    %c0_118 = arith.constant 0 : index
    %c0_119 = arith.constant 0 : index
    %194 = vector.load %arg2[%c0_117, %c0_118, %c0_119] : memref<3x16x128xf32, #tpu.memory_space<vmem>>, vector<1x16x128xf32>
    %195 = vector.shape_cast %194 : vector<1x16x128xf32> to vector<16x128xf32>
    %196 = arith.mulf %172, %195 : vector<16x128xf32>
    %cst_120 = arith.constant dense<0.000000e+00> : vector<128xf32>
    %197 = vector.multi_reduction <add>, %196, %cst_120 [0] : vector<16x128xf32> to vector<128xf32>
    %198 = vector.shape_cast %197 : vector<128xf32> to vector<1x128xf32>
    %cst_121 = arith.constant 2.000000e+00 : f32
    %199 = vector.broadcast %cst_121 : f32 to vector<1x128xf32>
    %200 = arith.mulf %198, %199 : vector<1x128xf32>
    %cst_122 = arith.constant 1.000000e+00 : f32
    %201 = vector.broadcast %cst_122 : f32 to vector<1x128xf32>
    %202 = arith.subf %200, %201 : vector<1x128xf32>
    %c0_123 = arith.constant 0 : index
    %c0_124 = arith.constant 0 : index
    %203 = vector.load %arg5[%c0_123, %c0_124] : memref<4x128xf32, #tpu.memory_space<vmem>>, vector<1x128xf32>
    tpu.vector_store %arg5[%c0_123, %c0_124], %202 {strides = array<i32>} : memref<4x128xf32, #tpu.memory_space<vmem>>, vector<1x128xf32>,
    %c1_125 = arith.constant 1 : index
    %c0_126 = arith.constant 0 : index
    %c0_127 = arith.constant 0 : index
    %204 = vector.load %arg2[%c1_125, %c0_126, %c0_127] : memref<3x16x128xf32, #tpu.memory_space<vmem>>, vector<1x16x128xf32>
    %205 = vector.shape_cast %204 : vector<1x16x128xf32> to vector<16x128xf32>
    %206 = arith.mulf %172, %205 : vector<16x128xf32>
    %cst_128 = arith.constant dense<0.000000e+00> : vector<128xf32>
    %207 = vector.multi_reduction <add>, %206, %cst_128 [0] : vector<16x128xf32> to vector<128xf32>
    %208 = vector.shape_cast %207 : vector<128xf32> to vector<1x128xf32>
    %cst_129 = arith.constant 2.000000e+00 : f32
    %209 = vector.broadcast %cst_129 : f32 to vector<1x128xf32>
    %210 = arith.mulf %208, %209 : vector<1x128xf32>
    %cst_130 = arith.constant 1.000000e+00 : f32
    %211 = vector.broadcast %cst_130 : f32 to vector<1x128xf32>
    %212 = arith.subf %210, %211 : vector<1x128xf32>
    %c1_131 = arith.constant 1 : index
    %c0_132 = arith.constant 0 : index
    %213 = vector.load %arg5[%c1_131, %c0_132] : memref<4x128xf32, #tpu.memory_space<vmem>>, vector<1x128xf32>
    tpu.vector_store %arg5[%c1_131, %c0_132], %212 {strides = array<i32>} : memref<4x128xf32, #tpu.memory_space<vmem>>, vector<1x128xf32>,
    %c2_133 = arith.constant 2 : index
    %c0_134 = arith.constant 0 : index
    %c0_135 = arith.constant 0 : index
    %214 = vector.load %arg2[%c2_133, %c0_134, %c0_135] : memref<3x16x128xf32, #tpu.memory_space<vmem>>, vector<1x16x128xf32>
    %215 = vector.shape_cast %214 : vector<1x16x128xf32> to vector<16x128xf32>
    %216 = arith.mulf %172, %215 : vector<16x128xf32>
    %cst_136 = arith.constant dense<0.000000e+00> : vector<128xf32>
    %217 = vector.multi_reduction <add>, %216, %cst_136 [0] : vector<16x128xf32> to vector<128xf32>
    %218 = vector.shape_cast %217 : vector<128xf32> to vector<1x128xf32>
    %cst_137 = arith.constant 2.000000e+00 : f32
    %219 = vector.broadcast %cst_137 : f32 to vector<1x128xf32>
    %220 = arith.mulf %218, %219 : vector<1x128xf32>
    %cst_138 = arith.constant 1.000000e+00 : f32
    %221 = vector.broadcast %cst_138 : f32 to vector<1x128xf32>
    %222 = arith.subf %220, %221 : vector<1x128xf32>
    %c2_139 = arith.constant 2 : index
    %c0_140 = arith.constant 0 : index
    %223 = vector.load %arg5[%c2_139, %c0_140] : memref<4x128xf32, #tpu.memory_space<vmem>>, vector<1x128xf32>
    tpu.vector_store %arg5[%c2_139, %c0_140], %222 {strides = array<i32>} : memref<4x128xf32, #tpu.memory_space<vmem>>, vector<1x128xf32>,
    return
  }
  func.func @transform_0(%arg0: i32, %arg1: memref<2xf32, #tpu.memory_space<smem>>) -> (i32, i32, i32) {
    %c0_i32 = arith.constant 0 : i32
    %c0_i32_0 = arith.constant 0 : i32
    %c0_i32_1 = arith.constant 0 : i32
    return %c0_i32, %c0_i32_0, %arg0 : i32, i32, i32
  }
  func.func @transform_1(%arg0: i32, %arg1: memref<2xf32, #tpu.memory_space<smem>>) -> (i32, i32) {
    %c0_i32 = arith.constant 0 : i32
    %c0_i32_0 = arith.constant 0 : i32
    return %c0_i32, %arg0 : i32, i32
  }
  func.func @transform_2(%arg0: i32, %arg1: memref<2xf32, #tpu.memory_space<smem>>) -> (i32, i32) {
    %c0_i32 = arith.constant 0 : i32
    %c0_i32_0 = arith.constant 0 : i32
    return %c0_i32, %arg0 : i32, i32
  }
  func.func @transform_3(%arg0: i32, %arg1: memref<2xf32, #tpu.memory_space<smem>>) -> (i32, i32) {
    %c0_i32 = arith.constant 0 : i32
    %c0_i32_0 = arith.constant 0 : i32
    return %c0_i32, %arg0 : i32, i32
  }
  func.func @transform_4(%arg0: i32, %arg1: memref<2xf32, #tpu.memory_space<smem>>) -> (i32, i32) {
    %c0_i32 = arith.constant 0 : i32
    %c0_i32_0 = arith.constant 0 : i32
    return %c0_i32, %arg0 : i32, i32
  }
}

</mosaic_0001>

<llo_original>
// kernel: tpu_custom_call.1
$region0: #{tpu_custom_call.1}
  #allocation0 [shape = 'u32[]', space=smem, size = 0x4, offset = 0x4, fixed_abs, tag = 'smem constant byte address 0x4 - core index']
  #allocation1 [shape = 'u32[144,128]{1,0:T(1,128)}', space=vmem, size = 0x12000, scoped, tag = 'internal scratch']
  #allocation2 [shape = 'f32[16,128]{1,0:T(8,128)}', space=vmem, size = 0x2000, scoped, tag = 'scratch operand']
  #allocation3 [shape = 's32[1]{0}', space=sflag, size = 0x4, scoped, tag = 'scoped memory for tpu_custom_call.1']
  #allocation4 [shape = 'u8[512]{0}', space=smem, size = 0x200, scoped, tag = 'prefetched SMEM operand 0']
  %s0 = inlined_call_operand.hbm [shape: f32[2], index: 0, kind: input, shape index: {}]
  %s1 = inlined_call_operand.hbm [shape: f32[3,16,256], index: 1, kind: input, shape index: {}]
  %s2 = inlined_call_operand.hbm [shape: f32[16,256], index: 2, kind: input, shape index: {}]
  %s3 = inlined_call_operand.hbm [shape: f32[16,256], index: 3, kind: input, shape index: {}]
  %s4 = inlined_call_operand.hbm [shape: f32[4,256], index: 4, kind: output, shape index: {0}]
  %s5 = inlined_call_operand.hbm [shape: f32[16,256], index: 5, kind: output, shape index: {1}]
  %6 = xla_tuple %s4, %s5
  %s7 = sld [smem:[#allocation0]]
  $region65: #{tpu_custom_call.1} parent=0
    _
  %s9 = ssub.s32 1, %s7
  %s10 = scalar_select 0, %s9, %s7
  %12 = dma.hbm_to_smem %s0, 16, [#allocation4], [#allocation3]
  %13 = dma.done [#allocation3], 16
  %14 = sfence
  $region1: #{tpu_custom_call.1} parent=0
    #allocation5 [shape = 'u8[49152]{0}', space=vmem, size = 0xc000, scoped, tag = 'input window, operand 1']
    #allocation6 [shape = 's32[2]{0}', space=sflag, size = 0x8, scoped, tag = 'scoped memory for tpu_custom_call.1']
    #allocation7 [shape = 's32[2]{0}', space=sflag, size = 0x8, scoped, tag = 'scoped memory for tpu_custom_call.1']
    #allocation8 [shape = 'u8[16384]{0}', space=vmem, size = 0x4000, scoped, tag = 'input window, operand 2']
    #allocation9 [shape = 's32[2]{0}', space=sflag, size = 0x8, scoped, tag = 'scoped memory for tpu_custom_call.1']
    #allocation10 [shape = 'u8[16384]{0}', space=vmem, size = 0x4000, scoped, tag = 'input window, operand 3']
    #allocation11 [shape = 'u8[4096]{0}', space=vmem, size = 0x1000, scoped, tag = 'output window, operand 0']
    #allocation12 [shape = 'u8[16384]{0}', space=vmem, size = 0x4000, scoped, tag = 'output window, operand 1']
    #allocation13 [shape = 's32[2]{0}', space=sflag, size = 0x8, scoped, tag = 'scoped memory for tpu_custom_call.1']
    %15 = vsyncpa [#allocation6], 0
    %s16 = scalar_lea.sflag [#allocation6], 1
    %17 = vsyncpa %s16, 0
    %18 = vsyncpa [#allocation9], 0
    %s19 = scalar_lea.sflag [#allocation9], 1
    %20 = vsyncpa %s19, 0
    %21 = vsyncpa [#allocation7], 0
    %s22 = scalar_lea.sflag [#allocation7], 1
    %23 = vsyncpa %s22, 0
    %24 = vsyncpa [#allocation13], 0
    %s25 = scalar_lea.sflag [#allocation13], 1
    %26 = vsyncpa %s25, 0
    loop: start=0, step=1, limit=4
    $region2: #{tpu_custom_call.1} parent=1 // loop_pre_header
      _
    $region3: #{tpu_custom_call.1} parent=1 // loop_header
      %s28 = sphi 0, %s32
      %p29 = scmp.ge.s32.totalorder %s28, 4
      %s38 = sphi 0, %s40
      %s41 = sphi 0, %s38
      %s42 = sphi 0, %s41
      %s58 = sphi 0, %s42
      %s64 = sphi 0, %s66
      %s67 = sphi 0, %s64
      %s68 = sphi 0, %s67
      %s84 = sphi 0, %s68
      %s90 = sphi 0, %s92
      %s93 = sphi 0, %s90
      %s94 = sphi 0, %s93
      %s110 = sphi 0, %s94
      %s116 = sphi 0, %s118
      %s119 = sphi 0, %s116
      %s120 = sphi 0, %s119
      %s136 = sphi 0, %s120
      %s142 = sphi 0, %s144
      %s145 = sphi 0, %s142
      %s146 = sphi 0, %s145
      %s162 = sphi 0, %s146
    $region4: #{tpu_custom_call.1} parent=1 // loop_header_branch
      %31 = sbr.rel (%p29) target = $region8
    $region5: #{tpu_custom_call.1} parent=1 // loop_body
      %s33 = ssub.s32 %s28, 1
      %s34 = ssub.s32 %s28, 2
      %s35 = sadd.s32 %s28, 1
      %s36 = ssub.s32 %s28, %s35
      %p37 = scmp.eq.s32.totalorder %s36, 0
      %s39 = sadd.s32 %s38, 1
      %s40 = scalar_select %p37, %s38, %s39
      %p43 = pneg %p37
      %p44 = scmp.eq.s32.totalorder %s28, 1
      %p45 = por %p43, %p44
      %p46 = scmp.ne.s32.totalorder %s38, %s41
      %p47 = scmp.eq.s32.totalorder %s28, 0
      %p48 = por %p46, %p47
      %p49 = scmp.ne.s32.totalorder %s38, %s41
      %p50 = scmp.eq.s32.totalorder %s33, 1
      %p51 = por %p49, %p50
      %p52 = scmp.ne.s32.totalorder %s41, %s42
      %p53 = scmp.eq.s32.totalorder %s33, 0
      %p54 = por %p52, %p53
      %p55 = scmp.ne.s32.totalorder %s41, %s42
      %p56 = scmp.eq.s32.totalorder %s34, 1
      %p57 = por %p55, %p56
      %p59 = scmp.ne.s32.totalorder %s42, %s58
      %p60 = scmp.eq.s32.totalorder %s34, 0
      %p61 = por %p59, %p60
      %s62 = ssub.s32 %s28, %s35
      %p63 = scmp.eq.s32.totalorder %s62, 0
      %s65 = sadd.s32 %s64, 1
      %s66 = scalar_select %p63, %s64, %s65
      %p69 = pneg %p63
      %p70 = scmp.eq.s32.totalorder %s28, 1
      %p71 = por %p69, %p70
      %p72 = scmp.ne.s32.totalorder %s64, %s67
      %p73 = scmp.eq.s32.totalorder %s28, 0
      %p74 = por %p72, %p73
      %p75 = scmp.ne.s32.totalorder %s64, %s67
      %p76 = scmp.eq.s32.totalorder %s33, 1
      %p77 = por %p75, %p76
      %p78 = scmp.ne.s32.totalorder %s67, %s68
      %p79 = scmp.eq.s32.totalorder %s33, 0
      %p80 = por %p78, %p79
      %p81 = scmp.ne.s32.totalorder %s67, %s68
      %p82 = scmp.eq.s32.totalorder %s34, 1
      %p83 = por %p81, %p82
      %p85 = scmp.ne.s32.totalorder %s68, %s84
      %p86 = scmp.eq.s32.totalorder %s34, 0
      %p87 = por %p85, %p86
      %s88 = ssub.s32 %s28, %s35
      %p89 = scmp.eq.s32.totalorder %s88, 0
      %s91 = sadd.s32 %s90, 1
      %s92 = scalar_select %p89, %s90, %s91
      %p95 = pneg %p89
      %p96 = scmp.eq.s32.totalorder %s28, 1
      %p97 = por %p95, %p96
      %p98 = scmp.ne.s32.totalorder %s90, %s93
      %p99 = scmp.eq.s32.totalorder %s28, 0
      %p100 = por %p98, %p99
      %p101 = scmp.ne.s32.totalorder %s90, %s93
      %p102 = scmp.eq.s32.totalorder %s33, 1
      %p103 = por %p101, %p102
      %p104 = scmp.ne.s32.totalorder %s93, %s94
      %p105 = scmp.eq.s32.totalorder %s33, 0
      %p106 = por %p104, %p105
      %p107 = scmp.ne.s32.totalorder %s93, %s94
      %p108 = scmp.eq.s32.totalorder %s34, 1
      %p109 = por %p107, %p108
      %p111 = scmp.ne.s32.totalorder %s94, %s110
      %p112 = scmp.eq.s32.totalorder %s34, 0
      %p113 = por %p111, %p112
      %s114 = ssub.s32 %s28, %s35
      %p115 = scmp.eq.s32.totalorder %s114, 0
      %s117 = sadd.s32 %s116, 1
      %s118 = scalar_select %p115, %s116, %s117
      %p121 = pneg %p115
      %p122 = scmp.eq.s32.totalorder %s28, 1
      %p123 = por %p121, %p122
      %p124 = scmp.ne.s32.totalorder %s116, %s119
      %p125 = scmp.eq.s32.totalorder %s28, 0
      %p126 = por %p124, %p125
      %p127 = scmp.ne.s32.totalorder %s116, %s119
      %p128 = scmp.eq.s32.totalorder %s33, 1
      %p129 = por %p127, %p128
      %p130 = scmp.ne.s32.totalorder %s119, %s120
      %p131 = scmp.eq.s32.totalorder %s33, 0
      %p132 = por %p130, %p131
      %p133 = scmp.ne.s32.totalorder %s119, %s120
      %p134 = scmp.eq.s32.totalorder %s34, 1
      %p135 = por %p133, %p134
      %p137 = scmp.ne.s32.totalorder %s120, %s136
      %p138 = scmp.eq.s32.totalorder %s34, 0
      %p139 = por %p137, %p138
      %s140 = ssub.s32 %s28, %s35
      %p141 = scmp.eq.s32.totalorder %s140, 0
      %s143 = sadd.s32 %s142, 1
      %s144 = scalar_select %p141, %s142, %s143
      %p147 = pneg %p141
      %p148 = scmp.eq.s32.totalorder %s28, 1
      %p149 = por %p147, %p148
      %p150 = scmp.ne.s32.totalorder %s142, %s145
      %p151 = scmp.eq.s32.totalorder %s28, 0
      %p152 = por %p150, %p151
      %p153 = scmp.ne.s32.totalorder %s142, %s145
      %p154 = scmp.eq.s32.totalorder %s33, 1
      %p155 = por %p153, %p154
      %p156 = scmp.ne.s32.totalorder %s145, %s146
      %p157 = scmp.eq.s32.totalorder %s33, 0
      %p158 = por %p156, %p157
      %p159 = scmp.ne.s32.totalorder %s145, %s146
      %p160 = scmp.eq.s32.totalorder %s34, 1
      %p161 = por %p159, %p160
      %p163 = scmp.ne.s32.totalorder %s146, %s162
      %p164 = scmp.eq.s32.totalorder %s34, 0
      %p165 = por %p163, %p164
      %p166 = scmp.le.s32.totalorder 1, %s28
      %p167 = scmp.lt.s32.totalorder %s28, 3
      %p168 = pnand %p166, %p167
      %p169 = pneg %p168
      // Predicated region
      $region9: #{tpu_custom_call.1} parent=5 // pred_check
        _
      $region10: #{tpu_custom_call.1} parent=5 // pred_check_branch
        %171 = sbr.rel (%p168) target = $region12
      $region11: #{tpu_custom_call.1} parent=5 // pred_region
        %s172 = ssub.s32 %s28, 1
      $region12: #{tpu_custom_call.1} parent=5 // pred_fallthru
        _
      %p173 = scmp.lt.s32.totalorder %s28, 2
      // Predicated region
      $region13: #{tpu_custom_call.1} parent=5 // pred_check
        %p174 = pneg %p173
      $region14: #{tpu_custom_call.1} parent=5 // pred_check_branch
        %176 = sbr.rel (%p174) target = $region16
      $region15: #{tpu_custom_call.1} parent=5 // pred_region
        // Predicated region
        $region17: #{tpu_custom_call.1} parent=15 // pred_check
          %p177 = pneg %p48
        $region18: #{tpu_custom_call.1} parent=15 // pred_check_branch
          %179 = sbr.rel (%p177) target = $region20
        $region19: #{tpu_custom_call.1} parent=15 // pred_region
          %s180 = sand.u32 %s38, 1
          %s181 = scalar_lea.sflag [#allocation6], %s180
          %s182 = sand.u32 %s38, 1
          %s183 = smul.addr %s182, 48
          %s184 = scalar_lea.vmem [#allocation5], %s183
          %s186 = ssub.s32 768, 768
          %187 = vsyncadd %s181, %s186
          %s188 = smul.addr %s28, 128
          %s189 = scalar_lea.hbm %s1, %s188
          %s190 = sshll.u32 %s184, 4
          %s191 = int_to_ptr.vmem [resolvable:$true] %s190
          %196 = dma.hbm_to_vmem [thread:$0]  %s189, 768, %s191, %s181, 256, 128, 8
        $region20: #{tpu_custom_call.1} parent=15 // pred_fallthru
          _
        // Predicated region
        $region21: #{tpu_custom_call.1} parent=15 // pred_check
          %p197 = pneg %p74
        $region22: #{tpu_custom_call.1} parent=15 // pred_check_branch
          %199 = sbr.rel (%p197) target = $region24
        $region23: #{tpu_custom_call.1} parent=15 // pred_region
          %s200 = sand.u32 %s28, 1
          %s201 = scalar_lea.sflag [#allocation9], %s200
          %s202 = sand.u32 %s64, 1
          %s203 = smul.addr %s202, 16
          %s204 = scalar_lea.vmem [#allocation8], %s203
          %s206 = ssub.s32 256, 256
          %207 = vsyncadd %s201, %s206
          %s208 = smul.addr %s28, 128
          %s209 = scalar_lea.hbm %s2, %s208
          %s210 = sshll.u32 %s204, 4
          %s211 = int_to_ptr.vmem [resolvable:$true] %s210
          %216 = dma.hbm_to_vmem [thread:$0]  %s209, 256, %s211, %s201, 256, 128, 8
        $region24: #{tpu_custom_call.1} parent=15 // pred_fallthru
          _
        // Predicated region
        $region25: #{tpu_custom_call.1} parent=15 // pred_check
          %p217 = pneg %p100
        $region26: #{tpu_custom_call.1} parent=15 // pred_check_branch
          %219 = sbr.rel (%p217) target = $region28
        $region27: #{tpu_custom_call.1} parent=15 // pred_region
          %s220 = sand.u32 %s28, 1
          %s221 = scalar_lea.sflag [#allocation9], %s220
          %s222 = sand.u32 %s90, 1
          %s223 = smul.addr %s222, 16
          %s224 = scalar_lea.vmem [#allocation10], %s223
          %s226 = ssub.s32 256, 256
          %227 = vsyncadd %s221, %s226
          %s228 = smul.addr %s28, 128
          %s229 = scalar_lea.hbm %s3, %s228
          %s230 = sshll.u32 %s224, 4
          %s231 = int_to_ptr.vmem [resolvable:$true] %s230
          %236 = dma.hbm_to_vmem [thread:$0]  %s229, 256, %s231, %s221, 256, 128, 8
        $region28: #{tpu_custom_call.1} parent=15 // pred_fallthru
          _
      $region16: #{tpu_custom_call.1} parent=5 // pred_fallthru
        _
      %p237 = scmp.le.s32.totalorder 1, %s28
      %p238 = scmp.lt.s32.totalorder %s28, 3
      %p239 = pnand %p237, %p238
      %p240 = pneg %p239
      // Predicated region
      $region29: #{tpu_custom_call.1} parent=5 // pred_check
        _
      $region30: #{tpu_custom_call.1} parent=5 // pred_check_branch
        %242 = sbr.rel (%p239) target = $region32
      $region31: #{tpu_custom_call.1} parent=5 // pred_region
        %s243 = ssub.s32 %s28, 1
        %s244 = sand.u32 %s41, 1
        %s245 = scalar_lea.sflag [#allocation6], %s244
        %s246 = sand.u32 %s41, 1
        %s247 = smul.addr %s246, 48
        %s248 = scalar_lea.vmem [#allocation5], %s247
        // Predicated region
        $region33: #{tpu_custom_call.1} parent=31 // pred_check
          %p249 = pneg %p54
        $region34: #{tpu_custom_call.1} parent=31 // pred_check_branch
          %251 = sbr.rel (%p249) target = $region36
        $region35: #{tpu_custom_call.1} parent=31 // pred_region
          %252 = dma.done %s245, 768
        $region36: #{tpu_custom_call.1} parent=31 // pred_fallthru
          _
        %s253 = sand.u32 %s33, 1
        %s254 = scalar_lea.sflag [#allocation9], %s253
        %s255 = sand.u32 %s67, 1
        %s256 = smul.addr %s255, 16
        %s257 = scalar_lea.vmem [#allocation8], %s256
        // Predicated region
        $region37: #{tpu_custom_call.1} parent=31 // pred_check
          %p258 = pneg %p80
        $region38: #{tpu_custom_call.1} parent=31 // pred_check_branch
          %260 = sbr.rel (%p258) target = $region40
        $region39: #{tpu_custom_call.1} parent=31 // pred_region
          %261 = dma.done %s254, 256
        $region40: #{tpu_custom_call.1} parent=31 // pred_fallthru
          _
        %s262 = sand.u32 %s33, 1
        %s263 = scalar_lea.sflag [#allocation9], %s262
        %s264 = sand.u32 %s93, 1
        %s265 = smul.addr %s264, 16
        %s266 = scalar_lea.vmem [#allocation10], %s265
        // Predicated region
        $region41: #{tpu_custom_call.1} parent=31 // pred_check
          %p267 = pneg %p106
        $region42: #{tpu_custom_call.1} parent=31 // pred_check_branch
          %269 = sbr.rel (%p267) target = $region44
        $region43: #{tpu_custom_call.1} parent=31 // pred_region
          %270 = dma.done %s263, 256
        $region44: #{tpu_custom_call.1} parent=31 // pred_fallthru
          _
        %s271 = sand.u32 %s41, 1
        %s272 = scalar_lea.sflag [#allocation6], %s271
        %s273 = sand.u32 %s41, 1
        %s274 = smul.addr %s273, 48
        %s275 = scalar_lea.vmem [#allocation5], %s274
        %p276 = pneg %p54
        %p277 = pneg %p51
        %s278 = sand.u32 %s33, 1
        %s279 = scalar_lea.sflag [#allocation9], %s278
        %s280 = sand.u32 %s67, 1
        %s281 = smul.addr %s280, 16
        %s282 = scalar_lea.vmem [#allocation8], %s281
        %p283 = pneg %p80
        %p284 = pneg %p77
        %s285 = sand.u32 %s33, 1
        %s286 = scalar_lea.sflag [#allocation9], %s285
        %s287 = sand.u32 %s93, 1
        %s288 = smul.addr %s287, 16
        %s289 = scalar_lea.vmem [#allocation10], %s288
        %p290 = pneg %p106
        %p291 = pneg %p103
        %p292 = pneg %p132
        %p293 = pneg %p129
        %s294 = sand.u32 %s119, 1
        %s295 = scalar_lea.sflag [#allocation7], %s294
        %s296 = sand.u32 %s119, 1
        %s297 = smul.addr %s296, 4
        %s298 = scalar_lea.vmem [#allocation11], %s297
        %p299 = pneg %p158
        %p300 = pneg %p155
        %s301 = sand.u32 %s145, 1
        %s302 = scalar_lea.sflag [#allocation13], %s301
        %s303 = sand.u32 %s145, 1
        %s304 = smul.addr %s303, 16
        %s305 = scalar_lea.vmem [#allocation12], %s304
        %v306 = vld [vmem:[%s266] sm:$0xff]
        %v307 = vld [vmem:[%s266 + $0x8] sm:$0x7f]
        %v308 = vld [vmem:[%s266 + $0x1] sm:$0xff]
        %v309 = vld [vmem:[%s266 + $0x9] sm:$0x7f]
        %v310 = vld [vmem:[%s257] sm:$0xff]
        %v311 = vld [vmem:[%s257 + $0x8] sm:$0x7f]
        %v312 = vadd.f32 %v310, -1.0
        %v313 = vadd.f32 %v311, -1.0
        %v314 = vand.u32 2147483647, %v312
        %v315 = vand.u32 2147483647, %v313
        %v316 = vsub.f32 0.0, %v314
        %v317 = vsub.f32 0.0, %v315
        %v318 = vmul.f32 %v316, 1.442695
        %v319 = vpow.pop %v318
        %v320 = vmul.f32 %v317, 1.442695
        %v321 = vpow.pop %v320
        %vm322 = vcmp.lt.f32.partialorder %v319, 1e-06
        %vm323 = vcmp.lt.f32.partialorder %v321, 1e-06
        %v324 = vadd.f32 %v319, 1.0
        %v325 = vadd.f32 %v321, 1.0
        %v326 = vlog2.pop %v324
        %v327 = vmul.f32 %v326, 0.6931472
        %v328 = vlog2.pop %v325
        %v329 = vmul.f32 %v328, 0.6931472
        %v330 = vsel %vm322, %v319, %v327
        %v331 = vsel %vm323, %v321, %v329
        %v332 = vmax.f32 %v312, 0.0
        %v333 = vmax.f32 %v313, 0.0
        %v334 = vadd.f32 %v332, %v330
        %v335 = vadd.f32 %v333, %v331
        %v336 = vld [vmem:[%s257 + $0xf] sm:$0x1]
        %v337 = vadd.f32 %v336, -1.0
        %v338 = vand.u32 2147483647, %v337
        %v339 = vsub.f32 0.0, %v338
        %v340 = vmul.f32 %v339, 1.442695
        %v341 = vpow.pop %v340
        %vm342 = vcmp.lt.f32.partialorder %v341, 1e-06
        %v343 = vadd.f32 %v341, 1.0
        %v344 = vlog2.pop %v343
        %v345 = vmul.f32 %v344, 0.6931472
        %v346 = vsel %vm342, %v341, %v345
        %v347 = vmax.f32 %v337, 0.0
        %v348 = vadd.f32 %v347, %v346
        %v349 = vsub.f32 %v308, %v306
        %v350 = vsub.f32 %v309, %v307
        %v351 = vsub.f32 0.0, %v349
        %v352 = vsub.f32 0.0, %v350
        %v353 = vmul.f32 %v351, %v334
        %v354 = vmul.f32 %v352, %v335
        %v355 = vmul.f32 %v353, 1.442695
        %v356 = vpow.pop %v355
        %v357 = vmul.f32 %v354, 1.442695
        %v358 = vpow.pop %v357
        %v359 = vsub.f32 1.0, %v356
        %v360 = vsub.f32 1.0, %v358
        %361 = vst [vmem:[#allocation2] sm:$0xff] %v359
        %362 = vst [vmem:[#allocation2 + $0x8] sm:$0x7f] %v360
        %v363 = vmul.f32 %v348, -1e+10
        %v364 = vmul.f32 %v363, 1.442695
        %v365 = vpow.pop %v364
        %v366 = vsub.f32 1.0, %v365
        %367 = vst [vmem:[#allocation2 + $0xf] sm:$0x1] %v366
        %v368 = vld [vmem:[#allocation2] sm:$0x1]
        %369 = vst [vmem:[%s305] sm:$0x1] %v368
        %v370 = vsub.f32 1.0, %v368
        %v371 = vadd.f32 %v370, 1e-10
        %v372 = vld [vmem:[#allocation2 + $0x1] sm:$0x1]
        %v373 = vmul.f32 %v372, %v371
        %374 = vst [vmem:[%s305 + $0x1] sm:$0x1] %v373
        %v375 = vsub.f32 1.0, %v372
        %v376 = vadd.f32 %v375, 1e-10
        %v377 = vmul.f32 %v371, %v376
        %v378 = vld [vmem:[#allocation2 + $0x2] sm:$0x1]
        %v379 = vmul.f32 %v378, %v377
        %380 = vst [vmem:[%s305 + $0x2] sm:$0x1] %v379
        %v381 = vsub.f32 1.0, %v378
        %v382 = vadd.f32 %v381, 1e-10
        %v383 = vmul.f32 %v377, %v382
        %v384 = vld [vmem:[#allocation2 + $0x3] sm:$0x1]
        %v385 = vmul.f32 %v384, %v383
        %386 = vst [vmem:[%s305 + $0x3] sm:$0x1] %v385
        %v387 = vsub.f32 1.0, %v384
        %v388 = vadd.f32 %v387, 1e-10
        %v389 = vmul.f32 %v383, %v388
        %v390 = vld [vmem:[#allocation2 + $0x4] sm:$0x1]
        %v391 = vmul.f32 %v390, %v389
        %392 = vst [vmem:[%s305 + $0x4] sm:$0x1] %v391
        %v393 = vsub.f32 1.0, %v390
        %v394 = vadd.f32 %v393, 1e-10
        %v395 = vmul.f32 %v389, %v394
        %v396 = vld [vmem:[#allocation2 + $0x5] sm:$0x1]
        %v397 = vmul.f32 %v396, %v395
        %398 = vst [vmem:[%s305 + $0x5] sm:$0x1] %v397
        %v399 = vsub.f32 1.0, %v396
        %v400 = vadd.f32 %v399, 1e-10
        %v401 = vmul.f32 %v395, %v400
        %v402 = vld [vmem:[#allocation2 + $0x6] sm:$0x1]
        %v403 = vmul.f32 %v402, %v401
        %404 = vst [vmem:[%s305 + $0x6] sm:$0x1] %v403
        %v405 = vsub.f32 1.0, %v402
        %v406 = vadd.f32 %v405, 1e-10
        %v407 = vmul.f32 %v401, %v406
        %v408 = vld [vmem:[#allocation2 + $0x7] sm:$0x1]
        %v409 = vmul.f32 %v408, %v407
        %410 = vst [vmem:[%s305 + $0x7] sm:$0x1] %v409
        %v411 = vsub.f32 1.0, %v408
        %v412 = vadd.f32 %v411, 1e-10
        %v413 = vmul.f32 %v407, %v412
        %v414 = vld [vmem:[#allocation2 + $0x8] sm:$0x1]
        %v415 = vmul.f32 %v414, %v413
        %416 = vst [vmem:[%s305 + $0x8] sm:$0x1] %v415
        %v417 = vsub.f32 1.0, %v414
        %v418 = vadd.f32 %v417, 1e-10
        %v419 = vmul.f32 %v413, %v418
        %v420 = vld [vmem:[#allocation2 + $0x9] sm:$0x1]
        %v421 = vmul.f32 %v420, %v419
        %422 = vst [vmem:[%s305 + $0x9] sm:$0x1] %v421
        %v423 = vsub.f32 1.0, %v420
        %v424 = vadd.f32 %v423, 1e-10
        %v425 = vmul.f32 %v419, %v424
        %v426 = vld [vmem:[#allocation2 + $0xa] sm:$0x1]
        %v427 = vmul.f32 %v426, %v425
        %428 = vst [vmem:[%s305 + $0xa] sm:$0x1] %v427
        %v429 = vsub.f32 1.0, %v426
        %v430 = vadd.f32 %v429, 1e-10
        %v431 = vmul.f32 %v425, %v430
        %v432 = vld [vmem:[#allocation2 + $0xb] sm:$0x1]
        %v433 = vmul.f32 %v432, %v431
        %434 = vst [vmem:[%s305 + $0xb] sm:$0x1] %v433
        %v435 = vsub.f32 1.0, %v432
        %v436 = vadd.f32 %v435, 1e-10
        %v437 = vmul.f32 %v431, %v436
        %v438 = vld [vmem:[#allocation2 + $0xc] sm:$0x1]
        %v439 = vmul.f32 %v438, %v437
        %440 = vst [vmem:[%s305 + $0xc] sm:$0x1] %v439
        %v441 = vsub.f32 1.0, %v438
        %v442 = vadd.f32 %v441, 1e-10
        %v443 = vmul.f32 %v437, %v442
        %v444 = vld [vmem:[#allocation2 + $0xd] sm:$0x1]
        %v445 = vmul.f32 %v444, %v443
        %446 = vst [vmem:[%s305 + $0xd] sm:$0x1] %v445
        %v447 = vsub.f32 1.0, %v444
        %v448 = vadd.f32 %v447, 1e-10
        %v449 = vmul.f32 %v443, %v448
        %v450 = vld [vmem:[#allocation2 + $0xe] sm:$0x1]
        %v451 = vmul.f32 %v450, %v449
        %452 = vst [vmem:[%s305 + $0xe] sm:$0x1] %v451
        %v453 = vsub.f32 1.0, %v450
        %v454 = vadd.f32 %v453, 1e-10
        %v455 = vmul.f32 %v449, %v454
        %v456 = vld [vmem:[#allocation2 + $0xf] sm:$0x1]
        %v457 = vmul.f32 %v456, %v455
        %458 = vst [vmem:[%s305 + $0xf] sm:$0x1] %v457
        %v459 = vld [vmem:[%s305] sm:$0xff]
        %v460 = vld [vmem:[%s305 + $0x8] sm:$0xff]
        %v461 = vld [vmem:[%s266] sm:$0xff]
        %v462 = vld [vmem:[%s266 + $0x8] sm:$0xff]
        %v463 = vadd.f32 %v459, %v460
        %v464 = vrot.slane %v463, 4
        %v465 = vadd.f32 %v463, %v464
        %v466 = vrot.slane %v465, 2
        %v467 = vadd.f32 %v465, %v466
        %v468 = vrot.slane %v467, 1
        %v469 = vadd.f32 %v467, %v468
        %v470 = vmul.f32 %v459, %v461
        %v471 = vmul.f32 %v460, %v462
        %v472 = vadd.f32 %v470, %v471
        %v473 = vrot.slane %v472, 4
        %v474 = vadd.f32 %v472, %v473
        %v475 = vrot.slane %v474, 2
        %v476 = vadd.f32 %v474, %v475
        %v477 = vrot.slane %v476, 1
        %v478 = vadd.f32 %v476, %v477
        %v479 = vrcp.pop %v469
        %v480 = vmul.f32 %v478, %v479
        %vm481 = vcmp.ne.f32.partialorder %v480, %v480
        %v482 = vsel %vm481, inf, %v480
        %s483 = sld [smem:[#allocation4]]
        %s484 = sld [smem:[#allocation4 + $0x1]]
        %v485 = vstv %s483
        %v486 = vmax.f32 %v485, %v482
        %v487 = vstv %s484
        %v488 = vmin.f32 %v487, %v486
        %v489 = vmul.f32 %v488, 2.0
        %v490 = vsub.f32 %v489, 1.0
        %491 = vst [vmem:[%s298 + $0x3] sm:$0x1] %v490
        %v492 = vld [vmem:[%s248] sm:$0xff]
        %v493 = vld [vmem:[%s248 + $0x8] sm:$0xff]
        %v494 = vmul.f32 %v459, %v492
        %v495 = vmul.f32 %v460, %v493
        %v496 = vadd.f32 %v494, %v495
        %v497 = vrot.slane %v496, 4
        %v498 = vadd.f32 %v496, %v497
        %v499 = vrot.slane %v498, 2
        %v500 = vadd.f32 %v498, %v499
        %v501 = vrot.slane %v500, 1
        %v502 = vadd.f32 %v500, %v501
        %v503 = vmul.f32 %v502, 2.0
        %v504 = vsub.f32 %v503, 1.0
        %505 = vst [vmem:[%s298] sm:$0x1] %v504
        %s506 = scalar_lea.vmem %s248, 16 [#allocation5]
        %v507 = vld [vmem:[%s506] sm:$0xff]
        %v508 = vld [vmem:[%s506 + $0x8] sm:$0xff]
        %v509 = vmul.f32 %v459, %v507
        %v510 = vmul.f32 %v460, %v508
        %v511 = vadd.f32 %v509, %v510
        %v512 = vrot.slane %v511, 4
        %v513 = vadd.f32 %v511, %v512
        %v514 = vrot.slane %v513, 2
        %v515 = vadd.f32 %v513, %v514
        %v516 = vrot.slane %v515, 1
        %v517 = vadd.f32 %v515, %v516
        %v518 = vmul.f32 %v517, 2.0
        %v519 = vsub.f32 %v518, 1.0
        %520 = vst [vmem:[%s298 + $0x1] sm:$0x1] %v519
        %s521 = scalar_lea.vmem %s248, 32 [#allocation5]
        %v522 = vld [vmem:[%s521] sm:$0xff]
        %v523 = vld [vmem:[%s521 + $0x8] sm:$0xff]
        %v524 = vmul.f32 %v459, %v522
        %v525 = vmul.f32 %v460, %v523
        %v526 = vadd.f32 %v524, %v525
        %v527 = vrot.slane %v526, 4
        %v528 = vadd.f32 %v526, %v527
        %v529 = vrot.slane %v528, 2
        %v530 = vadd.f32 %v528, %v529
        %v531 = vrot.slane %v530, 1
        %v532 = vadd.f32 %v530, %v531
        %v533 = vmul.f32 %v532, 2.0
        %v534 = vsub.f32 %v533, 1.0
        %535 = vst [vmem:[%s298 + $0x2] sm:$0x1] %v534
        %s536 = sand.u32 %s119, 1
        %s537 = scalar_lea.sflag [#allocation7], %s536
        %s538 = sand.u32 %s119, 1
        %s539 = smul.addr %s538, 4
        %s540 = scalar_lea.vmem [#allocation11], %s539
        %s541 = sand.u32 %s145, 1
        %s542 = scalar_lea.sflag [#allocation13], %s541
        %s543 = sand.u32 %s145, 1
        %s544 = smul.addr %s543, 16
        %s545 = scalar_lea.vmem [#allocation12], %s544
        // Predicated region
        $region45: #{tpu_custom_call.1} parent=31 // pred_check
          %p546 = pneg %p129
        $region46: #{tpu_custom_call.1} parent=31 // pred_check_branch
          %548 = sbr.rel (%p546) target = $region48
        $region47: #{tpu_custom_call.1} parent=31 // pred_region
          %s550 = ssub.s32 64, 64
          %551 = vsyncadd %s537, %s550
          %s552 = smul.addr %s33, 64
          %s553 = scalar_lea.hbm %s4, %s552
          %s555 = sshll.u32 %s540, 4
          %s556 = int_to_ptr.vmem [resolvable:$true] %s555
          %558 = dma.vmem_to_hbm [thread:$0]  %s556, 64, %s553, %s537
        $region48: #{tpu_custom_call.1} parent=31 // pred_fallthru
          _
        // Predicated region
        $region49: #{tpu_custom_call.1} parent=31 // pred_check
          %p559 = pneg %p155
        $region50: #{tpu_custom_call.1} parent=31 // pred_check_branch
          %561 = sbr.rel (%p559) target = $region52
        $region51: #{tpu_custom_call.1} parent=31 // pred_region
          %s563 = ssub.s32 256, 256
          %564 = vsyncadd %s542, %s563
          %s565 = smul.addr %s33, 128
          %s566 = scalar_lea.hbm %s5, %s565
          %s567 = sshll.u32 %s545, 4
          %s568 = int_to_ptr.vmem [resolvable:$true] %s567
          %573 = dma.vmem_to_hbm [thread:$0]  %s568, 256, %s566, %s542, 128, 256, 8
        $region52: #{tpu_custom_call.1} parent=31 // pred_fallthru
          _
      $region32: #{tpu_custom_call.1} parent=5 // pred_fallthru
        _
      %p574 = scmp.le.s32.totalorder 2, %s28
      // Predicated region
      $region53: #{tpu_custom_call.1} parent=5 // pred_check
        %p575 = pneg %p574
      $region54: #{tpu_custom_call.1} parent=5 // pred_check_branch
        %577 = sbr.rel (%p575) target = $region56
      $region55: #{tpu_custom_call.1} parent=5 // pred_region
        %s578 = ssub.s32 %s28, 2
        // Predicated region
        $region57: #{tpu_custom_call.1} parent=55 // pred_check
          %p579 = pneg %p135
        $region58: #{tpu_custom_call.1} parent=55 // pred_check_branch
          %581 = sbr.rel (%p579) target = $region60
        $region59: #{tpu_custom_call.1} parent=55 // pred_region
          %s582 = sand.u32 %s120, 1
          %s583 = scalar_lea.sflag [#allocation7], %s582
          %s584 = sand.u32 %s120, 1
          %s585 = smul.addr %s584, 4
          %s586 = scalar_lea.vmem [#allocation11], %s585
          %587 = dma.done %s583, 64
        $region60: #{tpu_custom_call.1} parent=55 // pred_fallthru
          _
        // Predicated region
        $region61: #{tpu_custom_call.1} parent=55 // pred_check
          %p588 = pneg %p161
        $region62: #{tpu_custom_call.1} parent=55 // pred_check_branch
          %590 = sbr.rel (%p588) target = $region64
        $region63: #{tpu_custom_call.1} parent=55 // pred_region
          %s591 = sand.u32 %s146, 1
          %s592 = scalar_lea.sflag [#allocation13], %s591
          %s593 = sand.u32 %s146, 1
          %s594 = smul.addr %s593, 16
          %s595 = scalar_lea.vmem [#allocation12], %s594
          %596 = dma.done %s592, 256
        $region64: #{tpu_custom_call.1} parent=55 // pred_fallthru
          _
      $region56: #{tpu_custom_call.1} parent=5 // pred_fallthru
        _
    $region6: #{tpu_custom_call.1} parent=1 // loop_footer
      %s32 = sadd.s32 1, %s28
    $region7: #{tpu_custom_call.1} parent=1 // loop_footer_branch
      %27 = sbr.rel target = $region3
    $region8: #{tpu_custom_call.1} parent=1 // loop_exit
      _
    %597 = vsyncpa [#allocation6], 1
    %s598 = scalar_lea.sflag [#allocation6], 1
    %599 = vsyncpa %s598, 1
    %600 = vsyncpa [#allocation9], 1
    %s601 = scalar_lea.sflag [#allocation9], 1
    %602 = vsyncpa %s601, 1
    %603 = vsyncpa [#allocation7], 1
    %s604 = scalar_lea.sflag [#allocation7], 1
    %605 = vsyncpa %s604, 1
    %606 = vsyncpa [#allocation13], 1
    %s607 = scalar_lea.sflag [#allocation13], 1
    %608 = vsyncpa %s607, 1

</llo_original>
